<compile_context>
chip_gen: v7x
topology: tpu7x:2x2x1
jax: 0.10.0
libtpu: 0.0.40
codegen_flags: <defaults>
</compile_context>

<pallas_src>
import jax
import jax.numpy as jnp
from jax import lax
from jax.experimental import pallas as pl
from jax.experimental.pallas import tpu as pltpu


def _downsample_kernel(x_ref, w_ref, s_ref, b_ref, a_ref, o_ref):
    """One (batch, row-tile) grid step.

    x_ref: (1, Cin, TH*2W)    raw NCHW input rows (2 input rows per output row)
    w_ref: (4, Cout, Cin)     conv taps, k = kh*2 + kw
    s_ref: (4, TH*2W, TH*Wo)  0/1 patch-selection matrices, k = kh*2 + kw
    b_ref: (Cout, 1)          bias
    a_ref: (Cout, 1)          PReLU slope
    o_ref: (1, Cout, TH*Wo)   NCHW output rows, flattened spatial on the lane axis
    """
    cout, t = o_ref.shape[1], o_ref.shape[2]
    xt = x_ref[0]                                                   # (Cin, TH*2W)
    acc = jnp.zeros((cout, t), jnp.float32)
    for k in range(4):                                              # unrolled: 4 conv taps
        # gather the k-th tap of every 2x2 patch (pure lane permutation, done on the MXU)
        xsel = jnp.dot(xt, s_ref[k], preferred_element_type=jnp.float32)        # (Cin, T)
        # contract over input channels
        acc = acc + jnp.dot(w_ref[k], xsel, preferred_element_type=jnp.float32)  # (Cout, T)
    y = acc + b_ref[...]                                            # bias, broadcast over lanes
    o_ref[0] = jnp.where(y > 0, y, a_ref[...] * y).astype(o_ref.dtype)


def _pick_row_tile(Ho, Wo, W, Cin, Cout, itemsize, vmem_budget=20 * 1024 * 1024):
    """Pick a row-tile TH (divisor of Ho). Lane extents of the blocks are TH*2W / TH*Wo, so
    they must be multiples of 128 or the full extent (TH == Ho)."""
    def vmem_bytes(th):
        t2w, t = th * 2 * W, th * Wo
        # 2x double-buffered input + output tiles, 4 selection matrices, weights
        return itemsize * (2 * Cin * t2w + 2 * Cout * t + 4 * t2w * t + 4 * Cout * Cin)

    valid = [th for th in range(1, Ho + 1)
             if Ho % th == 0 and (th == Ho or (th * Wo) % 128 == 0)]
    fitting = [th for th in valid if vmem_bytes(th) <= vmem_budget]
    # prefer the smallest tile that already gives ~1 MiB of in+out traffic per step
    good = [th for th in fitting
            if itemsize * (Cin * th * 2 * W + Cout * th * Wo) >= (1 << 20)]
    if good:
        th = min(good)
    elif fitting:
        th = max(fitting)
    else:
        th = min(valid, key=vmem_bytes)   # best effort
    return th, vmem_bytes(th)


def downsample_block(x, weight, bias, alpha):
    """x: (N, Cin, H, W) NCHW; weight: (Cout, Cin, 2, 2); bias, alpha: (Cout,).
    Returns (N, Cout, H//2, W//2) NCHW, matching nn.Conv2d(k=2, s=2) + nn.PReLU."""
    N, Cin, H, W = x.shape
    Cout = weight.shape[0]
    if H % 2 or W % 2:                       # Conv2d(k=2,s=2) drops the trailing row/column
        x = x[:, :, : H - H % 2, : W - W % 2]
        H, W = x.shape[2], x.shape[3]
    Ho, Wo = H // 2, W // 2

    TH, vmem_need = _pick_row_tile(Ho, Wo, W, Cin, Cout, x.dtype.itemsize)
    T2W, T = TH * 2 * W, TH * Wo
    n_tiles = Ho // TH

    # ---- zero-copy view of the activation + tiny constants (no extra HBM pass) ----
    x_flat = x.reshape(N, Cin, Ho * 2 * W)                 # identical memory layout to NCHW
    w4 = weight.transpose(2, 3, 0, 1).reshape(4, Cout, Cin).astype(jnp.float32)
    b2 = bias.reshape(Cout, 1).astype(jnp.float32)
    a2 = alpha.reshape(Cout, 1).astype(jnp.float32)

    # 0/1 selection matrices: S_k[j_in, th*Wo + wo] = 1  iff  j_in == th*2W + kh*W + 2*wo + kw
    th_i = jnp.arange(TH)[:, None]
    wo_i = jnp.arange(Wo)[None, :]
    rows = jnp.arange(T2W)[:, None]
    s_list = []
    for kh in (0, 1):
        for kw in (0, 1):
            j_in = (th_i * (2 * W) + kh * W + 2 * wo_i + kw).reshape(1, T)
            s_list.append((rows == j_in).astype(jnp.float32))
    s4 = jnp.stack(s_list, axis=0)                         # (4, T2W, T)

    flops = N * n_tiles * (8 * Cin * T2W * T + 8 * Cout * Cin * T)
    bytes_accessed = (x.dtype.itemsize * (x.size + N * Cout * Ho * Wo)
                      + 4 * (w4.size + s4.size))

    out_flat = pl.pallas_call(
        _downsample_kernel,
        out_shape=jax.ShapeDtypeStruct((N, Cout, Ho * Wo), x.dtype),
        grid=(N, n_tiles),
        in_specs=[
            pl.BlockSpec((1, Cin, T2W), lambda n, t: (n, 0, t)),
            pl.BlockSpec((4, Cout, Cin), lambda n, t: (0, 0, 0)),
            pl.BlockSpec((4, T2W, T), lambda n, t: (0, 0, 0)),
            pl.BlockSpec((Cout, 1), lambda n, t: (0, 0)),
            pl.BlockSpec((Cout, 1), lambda n, t: (0, 0)),
        ],
        out_specs=pl.BlockSpec((1, Cout, T), lambda n, t: (n, 0, t)),
        compiler_params=pltpu.CompilerParams(
            dimension_semantics=("parallel", "parallel"),
            vmem_limit_bytes=int(min(max(2 * vmem_need + (4 << 20), 32 << 20), 56 << 20)),
        ),
        cost_estimate=pl.CostEstimate(
            flops=int(flops), transcendentals=0, bytes_accessed=int(bytes_accessed)),
    )(x_flat, w4, s4, b2, a2)

    return out_flat.reshape(N, Cout, Ho, Wo)               # zero-copy split of the lane axis


def _reference(x, weight, bias, alpha):
    y = lax.conv_general_dilated(
        x, weight, window_strides=(2, 2), padding="VALID",
        dimension_numbers=("NCHW", "OIHW", "NCHW"))
    y = y + bias.reshape(1, -1, 1, 1)
    a = alpha.reshape(1, -1, 1, 1)
    return jnp.where(y > 0, y, a * y)


if __name__ == "__main__":
    # small shapes consistent with the module's forward
    N, Cin, Cout, H, W = 2, 4, 8, 16, 16

    key = jax.random.PRNGKey(0)
    kx, kw, kb = jax.random.split(key, 3)
    x = jax.random.normal(kx, (N, Cin, H, W), dtype=jnp.float32)
    weight = jax.random.normal(kw, (Cout, Cin, 2, 2), dtype=jnp.float32) * 0.1
    bias = jax.random.normal(kb, (Cout,), dtype=jnp.float32) * 0.1
    alpha = jnp.full((Cout,), 0.25, dtype=jnp.float32)     # PyTorch PReLU default init

    out = jax.block_until_ready(downsample_block(x, weight, bias, alpha))

    ref = _reference(x, weight, bias, alpha)
    assert out.shape == (N, Cout, H // 2, W // 2)
    assert jnp.allclose(out, ref, atol=2e-5, rtol=2e-5)

    print("KERNEL_OK")
</pallas_src>

<mosaic_0001>
module attributes {stable_mosaic.version = 11 : i64} {
  func.func @_downsample_kernel(%arg0: i32, %arg1: i32, %arg2: memref<1x4x256xf32, #tpu.memory_space<vmem>>, %arg3: memref<4x8x4xf32, #tpu.memory_space<vmem>>, %arg4: memref<4x256x64xf32, #tpu.memory_space<vmem>>, %arg5: memref<8x1xf32, #tpu.memory_space<vmem>>, %arg6: memref<8x1xf32, #tpu.memory_space<vmem>>, %arg7: memref<1x8x64xf32, #tpu.memory_space<vmem>>) attributes {dimension_semantics = [#tpu.dimension_semantics<parallel>, #tpu.dimension_semantics<parallel>], iteration_bounds = array<i64: 2, 1>, scalar_prefetch = 0 : i64, scratch_operands = 0 : i64, tpu.core_type = #tpu.core_type<tc>, window_params = [{transform_indices = @transform_0, window_bounds = array<i64: 1, 4, 256>}, {pipeline_mode = #tpu.pipeline_mode<synchronous>, transform_indices = @transform_1, window_bounds = array<i64: 4, 8, 4>}, {pipeline_mode = #tpu.pipeline_mode<synchronous>, transform_indices = @transform_2, window_bounds = array<i64: 4, 256, 64>}, {pipeline_mode = #tpu.pipeline_mode<synchronous>, transform_indices = @transform_3, window_bounds = array<i64: 8, 1>}, {pipeline_mode = #tpu.pipeline_mode<synchronous>, transform_indices = @transform_4, window_bounds = array<i64: 8, 1>}, {transform_indices = @transform_5, window_bounds = array<i64: 1, 8, 64>}]} {
    %c0 = arith.constant 0 : index
    %c0_0 = arith.constant 0 : index
    %c0_1 = arith.constant 0 : index
    %0 = vector.load %arg2[%c0, %c0_0, %c0_1] : memref<1x4x256xf32, #tpu.memory_space<vmem>>, vector<1x4x256xf32>
    %1 = vector.shape_cast %0 : vector<1x4x256xf32> to vector<4x256xf32>
    %cst = arith.constant 0.000000e+00 : f32
    %2 = vector.broadcast %cst : f32 to vector<8x64xf32>
    %c0_2 = arith.constant 0 : index
    %c0_3 = arith.constant 0 : index
    %c0_4 = arith.constant 0 : index
    %3 = vector.load %arg4[%c0_2, %c0_3, %c0_4] : memref<4x256x64xf32, #tpu.memory_space<vmem>>, vector<1x256x64xf32>
    %4 = vector.shape_cast %3 : vector<1x256x64xf32> to vector<256x64xf32>
    %cst_5 = arith.constant dense<0.000000e+00> : vector<4x64xf32>
    %5 = tpu.matmul %1, %4, %cst_5 {dimension_numbers = #tpu.dot_dimension_numbers<[1], [0], [0], [1], [0, 0, 1, 1], [], []>} : vector<4x256xf32>, vector<256x64xf32>, vector<4x64xf32> -> vector<4x64xf32>
    %c0_6 = arith.constant 0 : index
    %c0_7 = arith.constant 0 : index
    %c0_8 = arith.constant 0 : index
    %6 = vector.load %arg3[%c0_6, %c0_7, %c0_8] : memref<4x8x4xf32, #tpu.memory_space<vmem>>, vector<1x8x4xf32>
    %7 = vector.shape_cast %6 : vector<1x8x4xf32> to vector<8x4xf32>
    %cst_9 = arith.constant dense<0.000000e+00> : vector<8x64xf32>
    %8 = tpu.matmul %7, %5, %cst_9 {dimension_numbers = #tpu.dot_dimension_numbers<[1], [0], [0], [1], [0, 0, 1, 1], [], []>} : vector<8x4xf32>, vector<4x64xf32>, vector<8x64xf32> -> vector<8x64xf32>
    %9 = arith.addf %2, %8 : vector<8x64xf32>
    %c1 = arith.constant 1 : index
    %c0_10 = arith.constant 0 : index
    %c0_11 = arith.constant 0 : index
    %10 = vector.load %arg4[%c1, %c0_10, %c0_11] : memref<4x256x64xf32, #tpu.memory_space<vmem>>, vector<1x256x64xf32>
    %11 = vector.shape_cast %10 : vector<1x256x64xf32> to vector<256x64xf32>
    %cst_12 = arith.constant dense<0.000000e+00> : vector<4x64xf32>
    %12 = tpu.matmul %1, %11, %cst_12 {dimension_numbers = #tpu.dot_dimension_numbers<[1], [0], [0], [1], [0, 0, 1, 1], [], []>} : vector<4x256xf32>, vector<256x64xf32>, vector<4x64xf32> -> vector<4x64xf32>
    %c1_13 = arith.constant 1 : index
    %c0_14 = arith.constant 0 : index
    %c0_15 = arith.constant 0 : index
    %13 = vector.load %arg3[%c1_13, %c0_14, %c0_15] : memref<4x8x4xf32, #tpu.memory_space<vmem>>, vector<1x8x4xf32>
    %14 = vector.shape_cast %13 : vector<1x8x4xf32> to vector<8x4xf32>
    %cst_16 = arith.constant dense<0.000000e+00> : vector<8x64xf32>
    %15 = tpu.matmul %14, %12, %cst_16 {dimension_numbers = #tpu.dot_dimension_numbers<[1], [0], [0], [1], [0, 0, 1, 1], [], []>} : vector<8x4xf32>, vector<4x64xf32>, vector<8x64xf32> -> vector<8x64xf32>
    %16 = arith.addf %9, %15 : vector<8x64xf32>
    %c2 = arith.constant 2 : index
    %c0_17 = arith.constant 0 : index
    %c0_18 = arith.constant 0 : index
    %17 = vector.load %arg4[%c2, %c0_17, %c0_18] : memref<4x256x64xf32, #tpu.memory_space<vmem>>, vector<1x256x64xf32>
    %18 = vector.shape_cast %17 : vector<1x256x64xf32> to vector<256x64xf32>
    %cst_19 = arith.constant dense<0.000000e+00> : vector<4x64xf32>
    %19 = tpu.matmul %1, %18, %cst_19 {dimension_numbers = #tpu.dot_dimension_numbers<[1], [0], [0], [1], [0, 0, 1, 1], [], []>} : vector<4x256xf32>, vector<256x64xf32>, vector<4x64xf32> -> vector<4x64xf32>
    %c2_20 = arith.constant 2 : index
    %c0_21 = arith.constant 0 : index
    %c0_22 = arith.constant 0 : index
    %20 = vector.load %arg3[%c2_20, %c0_21, %c0_22] : memref<4x8x4xf32, #tpu.memory_space<vmem>>, vector<1x8x4xf32>
    %21 = vector.shape_cast %20 : vector<1x8x4xf32> to vector<8x4xf32>
    %cst_23 = arith.constant dense<0.000000e+00> : vector<8x64xf32>
    %22 = tpu.matmul %21, %19, %cst_23 {dimension_numbers = #tpu.dot_dimension_numbers<[1], [0], [0], [1], [0, 0, 1, 1], [], []>} : vector<8x4xf32>, vector<4x64xf32>, vector<8x64xf32> -> vector<8x64xf32>
    %23 = arith.addf %16, %22 : vector<8x64xf32>
    %c3 = arith.constant 3 : index
    %c0_24 = arith.constant 0 : index
    %c0_25 = arith.constant 0 : index
    %24 = vector.load %arg4[%c3, %c0_24, %c0_25] : memref<4x256x64xf32, #tpu.memory_space<vmem>>, vector<1x256x64xf32>
    %25 = vector.shape_cast %24 : vector<1x256x64xf32> to vector<256x64xf32>
    %cst_26 = arith.constant dense<0.000000e+00> : vector<4x64xf32>
    %26 = tpu.matmul %1, %25, %cst_26 {dimension_numbers = #tpu.dot_dimension_numbers<[1], [0], [0], [1], [0, 0, 1, 1], [], []>} : vector<4x256xf32>, vector<256x64xf32>, vector<4x64xf32> -> vector<4x64xf32>
    %c3_27 = arith.constant 3 : index
    %c0_28 = arith.constant 0 : index
    %c0_29 = arith.constant 0 : index
    %27 = vector.load %arg3[%c3_27, %c0_28, %c0_29] : memref<4x8x4xf32, #tpu.memory_space<vmem>>, vector<1x8x4xf32>
    %28 = vector.shape_cast %27 : vector<1x8x4xf32> to vector<8x4xf32>
    %cst_30 = arith.constant dense<0.000000e+00> : vector<8x64xf32>
    %29 = tpu.matmul %28, %26, %cst_30 {dimension_numbers = #tpu.dot_dimension_numbers<[1], [0], [0], [1], [0, 0, 1, 1], [], []>} : vector<8x4xf32>, vector<4x64xf32>, vector<8x64xf32> -> vector<8x64xf32>
    %30 = arith.addf %23, %29 : vector<8x64xf32>
    %c0_31 = arith.constant 0 : index
    %c0_32 = arith.constant 0 : index
    %31 = vector.load %arg5[%c0_31, %c0_32] : memref<8x1xf32, #tpu.memory_space<vmem>>, vector<8x1xf32>
    %32 = vector.broadcast %31 : vector<8x1xf32> to vector<8x64xf32>
    %33 = arith.addf %30, %32 : vector<8x64xf32>
    %cst_33 = arith.constant 0.000000e+00 : f32
    %34 = vector.broadcast %cst_33 : f32 to vector<8x64xf32>
    %35 = arith.cmpf ogt, %33, %34 : vector<8x64xf32>
    %c0_34 = arith.constant 0 : index
    %c0_35 = arith.constant 0 : index
    %36 = vector.load %arg6[%c0_34, %c0_35] : memref<8x1xf32, #tpu.memory_space<vmem>>, vector<8x1xf32>
    %37 = vector.broadcast %36 : vector<8x1xf32> to vector<8x64xf32>
    %38 = arith.mulf %37, %33 : vector<8x64xf32>
    %39 = arith.select %35, %33, %38 : vector<8x64xi1>, vector<8x64xf32>
    %c0_36 = arith.constant 0 : index
    %c0_37 = arith.constant 0 : index
    %c0_38 = arith.constant 0 : index
    %40 = vector.load %arg7[%c0_36, %c0_37, %c0_38] : memref<1x8x64xf32, #tpu.memory_space<vmem>>, vector<1x8x64xf32>
    %41 = vector.shape_cast %40 : vector<1x8x64xf32> to vector<8x64xf32>
    %42 = vector.shape_cast %39 : vector<8x64xf32> to vector<1x8x64xf32>
    tpu.vector_store %arg7[%c0_36, %c0_37, %c0_38], %42 {strides = array<i32>} : memref<1x8x64xf32, #tpu.memory_space<vmem>>, vector<1x8x64xf32>,
    return
  }
  func.func @transform_0(%arg0: i32, %arg1: i32) -> (i32, i32, i32) {
    %c0_i32 = arith.constant 0 : i32
    %c0_i32_0 = arith.constant 0 : i32
    return %arg0, %c0_i32, %arg1 : i32, i32, i32
  }
  func.func @transform_1(%arg0: i32, %arg1: i32) -> (i32, i32, i32) {
    %c0_i32 = arith.constant 0 : i32
    %c0_i32_0 = arith.constant 0 : i32
    %c0_i32_1 = arith.constant 0 : i32
    %c0_i32_2 = arith.constant 0 : i32
    return %c0_i32, %c0_i32_0, %c0_i32_1 : i32, i32, i32
  }
  func.func @transform_2(%arg0: i32, %arg1: i32) -> (i32, i32, i32) {
    %c0_i32 = arith.constant 0 : i32
    %c0_i32_0 = arith.constant 0 : i32
    %c0_i32_1 = arith.constant 0 : i32
    %c0_i32_2 = arith.constant 0 : i32
    return %c0_i32, %c0_i32_0, %c0_i32_1 : i32, i32, i32
  }
  func.func @transform_3(%arg0: i32, %arg1: i32) -> (i32, i32) {
    %c0_i32 = arith.constant 0 : i32
    %c0_i32_0 = arith.constant 0 : i32
    %c0_i32_1 = arith.constant 0 : i32
    return %c0_i32, %c0_i32_0 : i32, i32
  }
  func.func @transform_4(%arg0: i32, %arg1: i32) -> (i32, i32) {
    %c0_i32 = arith.constant 0 : i32
    %c0_i32_0 = arith.constant 0 : i32
    %c0_i32_1 = arith.constant 0 : i32
    return %c0_i32, %c0_i32_0 : i32, i32
  }
  func.func @transform_5(%arg0: i32, %arg1: i32) -> (i32, i32, i32) {
    %c0_i32 = arith.constant 0 : i32
    %c0_i32_0 = arith.constant 0 : i32
    return %arg0, %c0_i32, %arg1 : i32, i32, i32
  }
}

</mosaic_0001>

<llo_original>
// kernel: tpu_custom_call.1
$region0: #{tpu_custom_call.1}
  #allocation0 [shape = 'u32[]', space=smem, size = 0x4, offset = 0x4, fixed_abs, tag = 'smem constant byte address 0x4 - core index']
  #allocation1 [shape = 'u32[144,128]{1,0:T(1,128)}', space=vmem, size = 0x12000, scoped, tag = 'internal scratch']
  %s0 = inlined_call_operand.vmem [shape: f32[2,4,256], index: 0, kind: input, shape index: {}]
  %s1 = inlined_call_operand.vmem [shape: f32[4,8,4], index: 1, kind: input, shape index: {}]
  %s2 = inlined_call_operand.vmem [shape: f32[4,256,64], index: 2, kind: input, shape index: {}]
  %s3 = inlined_call_operand.vmem [shape: f32[8,1], index: 3, kind: input, shape index: {}]
  %s4 = inlined_call_operand.vmem [shape: f32[8,1], index: 4, kind: input, shape index: {}]
  %s5 = inlined_call_operand.hbm [shape: f32[2,8,64], index: 5, kind: output, shape index: {}]
  %s6 = sld [smem:[#allocation0]]
  $region53: #{tpu_custom_call.1} parent=0
    _
  %s8 = ssub.s32 1, %s6
  %s9 = scalar_select 0, %s8, %s6
  $region1: #{tpu_custom_call.1} parent=0
    #allocation2 [shape = 'u8[8192]{0}', space=vmem, size = 0x2000, scoped, tag = 'output window, operand 0']
    #allocation3 [shape = 's32[2]{0}', space=sflag, size = 0x8, scoped, tag = 'scoped memory for tpu_custom_call.1']
    %10 = vsyncpa [#allocation3], 0
    %s11 = scalar_lea.sflag [#allocation3], 1
    %12 = vsyncpa %s11, 0
    loop: start=0, step=1, limit=4
    $region2: #{tpu_custom_call.1} parent=1 // loop_pre_header
      _
    $region3: #{tpu_custom_call.1} parent=1 // loop_header
      %s14 = sphi 0, %s18
      %p15 = scmp.ge.s32.totalorder %s14, 4
      %s21 = sphi 0, %s33
      %s22 = sphi 0, %s29
      %s23 = sphi 0, %s21
      %s24 = sphi 0, %s22
      %s25 = sphi 0, %s23
      %s26 = sphi 0, %s24
      %s38 = sphi 0, %s40
      %s41 = sphi 0, %s38
      %s42 = sphi 0, %s41
      %s58 = sphi 0, %s42
      %s62 = sphi 0, %s62
      %s64 = sphi 0, %s62
      %s65 = sphi 0, %s64
      %s79 = sphi 0, %s65
      %s83 = sphi 0, %s83
      %s85 = sphi 0, %s83
      %s86 = sphi 0, %s85
      %s100 = sphi 0, %s86
      %s104 = sphi 0, %s104
      %s106 = sphi 0, %s104
      %s107 = sphi 0, %s106
      %s121 = sphi 0, %s107
      %s125 = sphi 0, %s125
      %s127 = sphi 0, %s125
      %s128 = sphi 0, %s127
      %s142 = sphi 0, %s128
      %s150 = sphi 0, %s152
      %s153 = sphi 0, %s150
      %s154 = sphi 0, %s153
      %s170 = sphi 0, %s154
    $region4: #{tpu_custom_call.1} parent=1 // loop_header_branch
      %17 = sbr.rel (%p15) target = $region8
    $region5: #{tpu_custom_call.1} parent=1 // loop_body
      %s19 = ssub.s32 %s14, 1
      %s20 = ssub.s32 %s14, 2
      %s27 = sadd.s32 1, %s22
      %p28 = scmp.ge.s32.totalorder %s27, 1
      %s29 = scalar_select %p28, 0, %s27
      %s30 = sadd.s32 1, %s21
      %s31 = scalar_select %p28, %s30, %s21
      %p32 = scmp.ge.s32.totalorder %s31, 2
      %s33 = scalar_select %p32, 0, %s31
      %s34 = ssub.s32 %s21, %s33
      %s35 = ssub.s32 %s22, %s29
      %s36 = sor.u32 %s34, %s35
      %p37 = scmp.eq.s32.totalorder %s36, 0
      %s39 = sadd.s32 %s38, 1
      %s40 = scalar_select %p37, %s38, %s39
      %p43 = pneg %p37
      %p44 = scmp.eq.s32.totalorder %s14, 1
      %p45 = por %p43, %p44
      %p46 = scmp.ne.s32.totalorder %s38, %s41
      %p47 = scmp.eq.s32.totalorder %s14, 0
      %p48 = por %p46, %p47
      %p49 = scmp.ne.s32.totalorder %s38, %s41
      %p50 = scmp.eq.s32.totalorder %s19, 1
      %p51 = por %p49, %p50
      %p52 = scmp.ne.s32.totalorder %s41, %s42
      %p53 = scmp.eq.s32.totalorder %s19, 0
      %p54 = por %p52, %p53
      %p55 = scmp.ne.s32.totalorder %s41, %s42
      %p56 = scmp.eq.s32.totalorder %s20, 1
      %p57 = por %p55, %p56
      %p59 = scmp.ne.s32.totalorder %s42, %s58
      %p60 = scmp.eq.s32.totalorder %s20, 0
      %p61 = por %p59, %p60
      %s63 = sadd.s32 %s62, 1
      %p66 = scmp.eq.s32.totalorder %s14, 1
      %p67 = scmp.ne.s32.totalorder %s62, %s64
      %p68 = scmp.eq.s32.totalorder %s14, 0
      %p69 = por %p67, %p68
      %p70 = scmp.ne.s32.totalorder %s62, %s64
      %p71 = scmp.eq.s32.totalorder %s19, 1
      %p72 = por %p70, %p71
      %p73 = scmp.ne.s32.totalorder %s64, %s65
      %p74 = scmp.eq.s32.totalorder %s19, 0
      %p75 = por %p73, %p74
      %p76 = scmp.ne.s32.totalorder %s64, %s65
      %p77 = scmp.eq.s32.totalorder %s20, 1
      %p78 = por %p76, %p77
      %p80 = scmp.ne.s32.totalorder %s65, %s79
      %p81 = scmp.eq.s32.totalorder %s20, 0
      %p82 = por %p80, %p81
      %s84 = sadd.s32 %s83, 1
      %p87 = scmp.eq.s32.totalorder %s14, 1
      %p88 = scmp.ne.s32.totalorder %s83, %s85
      %p89 = scmp.eq.s32.totalorder %s14, 0
      %p90 = por %p88, %p89
      %p91 = scmp.ne.s32.totalorder %s83, %s85
      %p92 = scmp.eq.s32.totalorder %s19, 1
      %p93 = por %p91, %p92
      %p94 = scmp.ne.s32.totalorder %s85, %s86
      %p95 = scmp.eq.s32.totalorder %s19, 0
      %p96 = por %p94, %p95
      %p97 = scmp.ne.s32.totalorder %s85, %s86
      %p98 = scmp.eq.s32.totalorder %s20, 1
      %p99 = por %p97, %p98
      %p101 = scmp.ne.s32.totalorder %s86, %s100
      %p102 = scmp.eq.s32.totalorder %s20, 0
      %p103 = por %p101, %p102
      %s105 = sadd.s32 %s104, 1
      %p108 = scmp.eq.s32.totalorder %s14, 1
      %p109 = scmp.ne.s32.totalorder %s104, %s106
      %p110 = scmp.eq.s32.totalorder %s14, 0
      %p111 = por %p109, %p110
      %p112 = scmp.ne.s32.totalorder %s104, %s106
      %p113 = scmp.eq.s32.totalorder %s19, 1
      %p114 = por %p112, %p113
      %p115 = scmp.ne.s32.totalorder %s106, %s107
      %p116 = scmp.eq.s32.totalorder %s19, 0
      %p117 = por %p115, %p116
      %p118 = scmp.ne.s32.totalorder %s106, %s107
      %p119 = scmp.eq.s32.totalorder %s20, 1
      %p120 = por %p118, %p119
      %p122 = scmp.ne.s32.totalorder %s107, %s121
      %p123 = scmp.eq.s32.totalorder %s20, 0
      %p124 = por %p122, %p123
      %s126 = sadd.s32 %s125, 1
      %p129 = scmp.eq.s32.totalorder %s14, 1
      %p130 = scmp.ne.s32.totalorder %s125, %s127
      %p131 = scmp.eq.s32.totalorder %s14, 0
      %p132 = por %p130, %p131
      %p133 = scmp.ne.s32.totalorder %s125, %s127
      %p134 = scmp.eq.s32.totalorder %s19, 1
      %p135 = por %p133, %p134
      %p136 = scmp.ne.s32.totalorder %s127, %s128
      %p137 = scmp.eq.s32.totalorder %s19, 0
      %p138 = por %p136, %p137
      %p139 = scmp.ne.s32.totalorder %s127, %s128
      %p140 = scmp.eq.s32.totalorder %s20, 1
      %p141 = por %p139, %p140
      %p143 = scmp.ne.s32.totalorder %s128, %s142
      %p144 = scmp.eq.s32.totalorder %s20, 0
      %p145 = por %p143, %p144
      %s146 = ssub.s32 %s21, %s33
      %s147 = ssub.s32 %s22, %s29
      %s148 = sor.u32 %s146, %s147
      %p149 = scmp.eq.s32.totalorder %s148, 0
      %s151 = sadd.s32 %s150, 1
      %s152 = scalar_select %p149, %s150, %s151
      %p155 = pneg %p149
      %p156 = scmp.eq.s32.totalorder %s14, 1
      %p157 = por %p155, %p156
      %p158 = scmp.ne.s32.totalorder %s150, %s153
      %p159 = scmp.eq.s32.totalorder %s14, 0
      %p160 = por %p158, %p159
      %p161 = scmp.ne.s32.totalorder %s150, %s153
      %p162 = scmp.eq.s32.totalorder %s19, 1
      %p163 = por %p161, %p162
      %p164 = scmp.ne.s32.totalorder %s153, %s154
      %p165 = scmp.eq.s32.totalorder %s19, 0
      %p166 = por %p164, %p165
      %p167 = scmp.ne.s32.totalorder %s153, %s154
      %p168 = scmp.eq.s32.totalorder %s20, 1
      %p169 = por %p167, %p168
      %p171 = scmp.ne.s32.totalorder %s154, %s170
      %p172 = scmp.eq.s32.totalorder %s20, 0
      %p173 = por %p171, %p172
      %p174 = scmp.le.s32.totalorder 1, %s14
      %p175 = scmp.lt.s32.totalorder %s14, 3
      %p176 = pnand %p174, %p175
      %p177 = pneg %p176
      // Predicated region
      $region9: #{tpu_custom_call.1} parent=5 // pred_check
        _
      $region10: #{tpu_custom_call.1} parent=5 // pred_check_branch
        %179 = sbr.rel (%p176) target = $region12
      $region11: #{tpu_custom_call.1} parent=5 // pred_region
        %s180 = ssub.s32 %s14, 1
        // Predicated region
        $region13: #{tpu_custom_call.1} parent=11 // pred_check
          %p181 = pneg %p75
        $region14: #{tpu_custom_call.1} parent=11 // pred_check_branch
          %183 = sbr.rel (%p181) target = $region16
        $region15: #{tpu_custom_call.1} parent=11 // pred_region
          _
        $region16: #{tpu_custom_call.1} parent=11 // pred_fallthru
          _
        // Predicated region
        $region17: #{tpu_custom_call.1} parent=11 // pred_check
          %p184 = pneg %p96
        $region18: #{tpu_custom_call.1} parent=11 // pred_check_branch
          %186 = sbr.rel (%p184) target = $region20
        $region19: #{tpu_custom_call.1} parent=11 // pred_region
          _
        $region20: #{tpu_custom_call.1} parent=11 // pred_fallthru
          _
        // Predicated region
        $region21: #{tpu_custom_call.1} parent=11 // pred_check
          %p187 = pneg %p117
        $region22: #{tpu_custom_call.1} parent=11 // pred_check_branch
          %189 = sbr.rel (%p187) target = $region24
        $region23: #{tpu_custom_call.1} parent=11 // pred_region
          _
        $region24: #{tpu_custom_call.1} parent=11 // pred_fallthru
          _
        // Predicated region
        $region25: #{tpu_custom_call.1} parent=11 // pred_check
          %p190 = pneg %p138
        $region26: #{tpu_custom_call.1} parent=11 // pred_check_branch
          %192 = sbr.rel (%p190) target = $region28
        $region27: #{tpu_custom_call.1} parent=11 // pred_region
          _
        $region28: #{tpu_custom_call.1} parent=11 // pred_fallthru
          _
      $region12: #{tpu_custom_call.1} parent=5 // pred_fallthru
        _
      %p193 = scmp.lt.s32.totalorder %s14, 2
      // Predicated region
      $region29: #{tpu_custom_call.1} parent=5 // pred_check
        %p194 = pneg %p193
      $region30: #{tpu_custom_call.1} parent=5 // pred_check_branch
        %196 = sbr.rel (%p194) target = $region32
      $region31: #{tpu_custom_call.1} parent=5 // pred_region
        // Predicated region
        $region33: #{tpu_custom_call.1} parent=31 // pred_check
          %p197 = pneg %p48
        $region34: #{tpu_custom_call.1} parent=31 // pred_check_branch
          %199 = sbr.rel (%p197) target = $region36
        $region35: #{tpu_custom_call.1} parent=31 // pred_region
          %s200 = smul.u32 2, %s22
          %p201 = scmp.lt.s32.totalorder %s21, 1
          %s202 = scalar_select %p201, %s21, 1
          %p203 = scmp.lt.s32.totalorder %s200, 1
          %s204 = scalar_select %p203, %s200, 1
          %s205 = smul.addr %s202, 2
          %s206 = sadd.s32 %s204, %s205
          %s207 = smul.addr %s206, 4
          %s208 = scalar_lea.vmem %s0, %s207
          %s209 = smul.u32 2, %s22
        $region36: #{tpu_custom_call.1} parent=31 // pred_fallthru
          _
      $region32: #{tpu_custom_call.1} parent=5 // pred_fallthru
        _
      %p210 = scmp.le.s32.totalorder 1, %s14
      %p211 = scmp.lt.s32.totalorder %s14, 3
      %p212 = pnand %p210, %p211
      %p213 = pneg %p212
      // Predicated region
      $region37: #{tpu_custom_call.1} parent=5 // pred_check
        _
      $region38: #{tpu_custom_call.1} parent=5 // pred_check_branch
        %215 = sbr.rel (%p212) target = $region40
      $region39: #{tpu_custom_call.1} parent=5 // pred_region
        %s216 = ssub.s32 %s14, 1
        %s217 = smul.u32 2, %s24
        %p218 = scmp.lt.s32.totalorder %s23, 1
        %s219 = scalar_select %p218, %s23, 1
        %p220 = scmp.lt.s32.totalorder %s217, 1
        %s221 = scalar_select %p220, %s217, 1
        %s222 = smul.addr %s219, 2
        %s223 = sadd.s32 %s221, %s222
        %s224 = smul.addr %s223, 4
        %s225 = scalar_lea.vmem %s0, %s224
        %p226 = pneg %p54
        %p227 = pneg %p51
        %p228 = pneg %p75
        %p229 = pneg %p72
        %p230 = pneg %p96
        %p231 = pneg %p93
        %p232 = pneg %p117
        %p233 = pneg %p114
        %p234 = pneg %p138
        %p235 = pneg %p135
        %p236 = pneg %p166
        %p237 = pneg %p163
        %s238 = sand.u32 %s153, 1
        %s239 = scalar_lea.sflag [#allocation3], %s238
        %s240 = sand.u32 %s153, 1
        %s241 = smul.addr %s240, 8
        %s242 = scalar_lea.vmem [#allocation2], %s241
        %s243 = smul.u32 2, %s24
        %p244 = scmp.lt.s32.totalorder %s23, 1
        %s245 = scalar_select %p244, %s23, 1
        %p246 = scmp.lt.s32.totalorder %s243, 1
        %s247 = scalar_select %p246, %s243, 1
        %s248 = smul.addr %s245, 2
        %s249 = sadd.s32 %s247, %s248
        %s250 = smul.addr %s249, 4
        %s251 = scalar_lea.vmem %s0, %s250
        %s252 = smul.u32 2, %s24
        %v253 = vld [vmem:[%s251] sm:$0xff]
        %v254 = vld [vmem:[%s2] sm:$0xff]
        %v255 = vld [vmem:[%s2 + $0x8] sm:$0xff]
        %v256 = vld [vmem:[%s2 + $0x10] sm:$0xff]
        %v257 = vld [vmem:[%s2 + $0x18] sm:$0xff]
        %v258 = vld [vmem:[%s2 + $0x20] sm:$0xff]
        %v259 = vld [vmem:[%s2 + $0x28] sm:$0xff]
        %v260 = vld [vmem:[%s2 + $0x30] sm:$0xff]
        %v261 = vld [vmem:[%s2 + $0x38] sm:$0xff]
        %v262 = vld [vmem:[%s2 + $0x40] sm:$0xff]
        %v263 = vld [vmem:[%s2 + $0x48] sm:$0xff]
        %v264 = vld [vmem:[%s2 + $0x50] sm:$0xff]
        %v265 = vld [vmem:[%s2 + $0x58] sm:$0xff]
        %v266 = vld [vmem:[%s2 + $0x60] sm:$0xff]
        %v267 = vld [vmem:[%s2 + $0x68] sm:$0xff]
        %v268 = vld [vmem:[%s2 + $0x70] sm:$0xff]
        %v269 = vld [vmem:[%s2 + $0x78] sm:$0xff]
        %v270 = vld [vmem:[%s2 + $0x80] sm:$0xff]
        %v271 = vld [vmem:[%s2 + $0x88] sm:$0xff]
        %v272 = vld [vmem:[%s2 + $0x90] sm:$0xff]
        %v273 = vld [vmem:[%s2 + $0x98] sm:$0xff]
        %v274 = vld [vmem:[%s2 + $0xa0] sm:$0xff]
        %v275 = vld [vmem:[%s2 + $0xa8] sm:$0xff]
        %v276 = vld [vmem:[%s2 + $0xb0] sm:$0xff]
        %v277 = vld [vmem:[%s2 + $0xb8] sm:$0xff]
        %v278 = vld [vmem:[%s2 + $0xc0] sm:$0xff]
        %v279 = vld [vmem:[%s2 + $0xc8] sm:$0xff]
        %v280 = vld [vmem:[%s2 + $0xd0] sm:$0xff]
        %v281 = vld [vmem:[%s2 + $0xd8] sm:$0xff]
        %v282 = vld [vmem:[%s2 + $0xe0] sm:$0xff]
        %v283 = vld [vmem:[%s2 + $0xe8] sm:$0xff]
        %v284 = vld [vmem:[%s2 + $0xf0] sm:$0xff]
        %v285 = vld [vmem:[%s2 + $0xf8] sm:$0xff]
        %v287 = vcombine.high %v253, %v253
        %289 = vmatprep.subr.mxu0 0.0
        %290 = vmatpush1.msra.mxu0 %v254
        %291 = vmatprep.subr.mxu0 0.0
        %292 = vmatpush1.msra.mxu0 %v255
        %293 = vmatprep.subr.mxu0 0.0
        %294 = vmatpush1.msra.mxu0 %v256
        %295 = vmatprep.subr.mxu0 0.0
        %296 = vmatpush1.msra.mxu0 %v257
        %297 = vmatprep.subr.mxu0 0.0
        %298 = vmatpush1.msra.mxu0 %v258
        %299 = vmatprep.subr.mxu0 0.0
        %300 = vmatpush1.msra.mxu0 %v259
        %301 = vmatprep.subr.mxu0 0.0
        %302 = vmatpush1.msra.mxu0 %v260
        %303 = vmatprep.subr.mxu0 0.0
        %304 = vmatpush1.msra.mxu0 %v261
        %305 = vmatprep.subr.mxu0 0.0
        %306 = vmatpush1.msra.mxu0 %v262
        %307 = vmatprep.subr.mxu0 0.0
        %308 = vmatpush1.msra.mxu0 %v263
        %309 = vmatprep.subr.mxu0 0.0
        %310 = vmatpush1.msra.mxu0 %v264
        %311 = vmatprep.subr.mxu0 0.0
        %312 = vmatpush1.msra.mxu0 %v265
        %313 = vmatprep.subr.mxu0 0.0
        %314 = vmatpush1.msra.mxu0 %v266
        %315 = vmatprep.subr.mxu0 0.0
        %316 = vmatpush1.msra.mxu0 %v267
        %317 = vmatprep.subr.mxu0 0.0
        %318 = vmatpush1.msra.mxu0 %v268
        %319 = vmatprep.subr.mxu0 0.0
        %320 = vmatpush1.msra.mxu0 %v269
        %321 = vmatprep.subr.mxu0 0.0
        %322 = vmatpush1.msra.mxu0 %v270
        %323 = vmatprep.subr.mxu0 0.0
        %324 = vmatpush1.msra.mxu0 %v271
        %325 = vmatprep.subr.mxu0 0.0
        %326 = vmatpush1.msra.mxu0 %v272
        %327 = vmatprep.subr.mxu0 0.0
        %328 = vmatpush1.msra.mxu0 %v273
        %329 = vmatprep.subr.mxu0 0.0
        %330 = vmatpush1.msra.mxu0 %v274
        %331 = vmatprep.subr.mxu0 0.0
        %332 = vmatpush1.msra.mxu0 %v275
        %333 = vmatprep.subr.mxu0 0.0
        %334 = vmatpush1.msra.mxu0 %v276
        %335 = vmatprep.subr.mxu0 0.0
        %336 = vmatpush1.msra.mxu0 %v277
        %337 = vmatprep.subr.mxu0 0.0
        %338 = vmatpush1.msra.mxu0 %v278
        %339 = vmatprep.subr.mxu0 0.0
        %340 = vmatpush1.msra.mxu0 %v279
        %341 = vmatprep.subr.mxu0 0.0
        %342 = vmatpush1.msra.mxu0 %v280
        %343 = vmatprep.subr.mxu0 0.0
        %344 = vmatpush1.msra.mxu0 %v281
        %345 = vmatprep.subr.mxu0 0.0
        %346 = vmatpush1.msra.mxu0 %v282
        %347 = vmatprep.subr.mxu0 0.0
        %348 = vmatpush1.msra.mxu0 %v283
        %349 = vmatprep.subr.mxu0 0.0
        %350 = vmatpush1.msra.mxu0 %v284
        %351 = vmatprep.subr.mxu0 0.0
        %352 = vmatpush1.msra.mxu0 %v285
        %353 = vmatprep.mubr.f32.mxu0 %v287
        %354 = vmatmul.mubr.f32.gmra.mrb[0].mxu0 %v253
        %v355 = vpop.f32.mrb[0].mxu0
        %v356 = vadd.f32 0.0, %v355
        %v357 = vpop.f32.mrb[0].mxu0
        %358 = vdwg.mxu0
        %v359 = vld [vmem:[%s1] sm:$0xff]
        %s360 = scalar_lea.vmem %s2, 256
        %v361 = vld [vmem:[%s360] sm:$0xff]
        %v362 = vld [vmem:[%s360 + $0x8] sm:$0xff]
        %v363 = vld [vmem:[%s360 + $0x10] sm:$0xff]
        %v364 = vld [vmem:[%s360 + $0x18] sm:$0xff]
        %v365 = vld [vmem:[%s360 + $0x20] sm:$0xff]
        %v366 = vld [vmem:[%s360 + $0x28] sm:$0xff]
        %v367 = vld [vmem:[%s360 + $0x30] sm:$0xff]
        %v368 = vld [vmem:[%s360 + $0x38] sm:$0xff]
        %v369 = vld [vmem:[%s360 + $0x40] sm:$0xff]
        %v370 = vld [vmem:[%s360 + $0x48] sm:$0xff]
        %v371 = vld [vmem:[%s360 + $0x50] sm:$0xff]
        %v372 = vld [vmem:[%s360 + $0x58] sm:$0xff]
        %v373 = vld [vmem:[%s360 + $0x60] sm:$0xff]
        %v374 = vld [vmem:[%s360 + $0x68] sm:$0xff]
        %v375 = vld [vmem:[%s360 + $0x70] sm:$0xff]
        %v376 = vld [vmem:[%s360 + $0x78] sm:$0xff]
        %v377 = vld [vmem:[%s360 + $0x80] sm:$0xff]
        %v378 = vld [vmem:[%s360 + $0x88] sm:$0xff]
        %v379 = vld [vmem:[%s360 + $0x90] sm:$0xff]
        %v380 = vld [vmem:[%s360 + $0x98] sm:$0xff]
        %v381 = vld [vmem:[%s360 + $0xa0] sm:$0xff]
        %v382 = vld [vmem:[%s360 + $0xa8] sm:$0xff]
        %v383 = vld [vmem:[%s360 + $0xb0] sm:$0xff]
        %v384 = vld [vmem:[%s360 + $0xb8] sm:$0xff]
        %v385 = vld [vmem:[%s360 + $0xc0] sm:$0xff]
        %v386 = vld [vmem:[%s360 + $0xc8] sm:$0xff]
        %v387 = vld [vmem:[%s360 + $0xd0] sm:$0xff]
        %v388 = vld [vmem:[%s360 + $0xd8] sm:$0xff]
        %v389 = vld [vmem:[%s360 + $0xe0] sm:$0xff]
        %v390 = vld [vmem:[%s360 + $0xe8] sm:$0xff]
        %v391 = vld [vmem:[%s360 + $0xf0] sm:$0xff]
        %v392 = vld [vmem:[%s360 + $0xf8] sm:$0xff]
        %393 = vmatprep.subr.mxu0 0.0
        %394 = vmatpush1.msra.mxu0 %v361
        %395 = vmatprep.subr.mxu0 0.0
        %396 = vmatpush1.msra.mxu0 %v362
        %397 = vmatprep.subr.mxu0 0.0
        %398 = vmatpush1.msra.mxu0 %v363
        %399 = vmatprep.subr.mxu0 0.0
        %400 = vmatpush1.msra.mxu0 %v364
        %401 = vmatprep.subr.mxu0 0.0
        %402 = vmatpush1.msra.mxu0 %v365
        %403 = vmatprep.subr.mxu0 0.0
        %404 = vmatpush1.msra.mxu0 %v366
        %405 = vmatprep.subr.mxu0 0.0
        %406 = vmatpush1.msra.mxu0 %v367
        %407 = vmatprep.subr.mxu0 0.0
        %408 = vmatpush1.msra.mxu0 %v368
        %409 = vmatprep.subr.mxu0 0.0
        %410 = vmatpush1.msra.mxu0 %v369
        %411 = vmatprep.subr.mxu0 0.0
        %412 = vmatpush1.msra.mxu0 %v370
        %413 = vmatprep.subr.mxu0 0.0
        %414 = vmatpush1.msra.mxu0 %v371
        %415 = vmatprep.subr.mxu0 0.0
        %416 = vmatpush1.msra.mxu0 %v372
        %417 = vmatprep.subr.mxu0 0.0
        %418 = vmatpush1.msra.mxu0 %v373
        %419 = vmatprep.subr.mxu0 0.0
        %420 = vmatpush1.msra.mxu0 %v374
        %421 = vmatprep.subr.mxu0 0.0
        %422 = vmatpush1.msra.mxu0 %v375
        %423 = vmatprep.subr.mxu0 0.0
        %424 = vmatpush1.msra.mxu0 %v376
        %425 = vmatprep.subr.mxu0 0.0
        %426 = vmatpush1.msra.mxu0 %v377
        %427 = vmatprep.subr.mxu0 0.0
        %428 = vmatpush1.msra.mxu0 %v378
        %429 = vmatprep.subr.mxu0 0.0
        %430 = vmatpush1.msra.mxu0 %v379
        %431 = vmatprep.subr.mxu0 0.0
        %432 = vmatpush1.msra.mxu0 %v380
        %433 = vmatprep.subr.mxu0 0.0
        %434 = vmatpush1.msra.mxu0 %v381
        %435 = vmatprep.subr.mxu0 0.0
        %436 = vmatpush1.msra.mxu0 %v382
        %437 = vmatprep.subr.mxu0 0.0
        %438 = vmatpush1.msra.mxu0 %v383
        %439 = vmatprep.subr.mxu0 0.0
        %440 = vmatpush1.msra.mxu0 %v384
        %441 = vmatprep.subr.mxu0 0.0
        %442 = vmatpush1.msra.mxu0 %v385
        %443 = vmatprep.subr.mxu0 0.0
        %444 = vmatpush1.msra.mxu0 %v386
        %445 = vmatprep.subr.mxu0 0.0
        %446 = vmatpush1.msra.mxu0 %v387
        %447 = vmatprep.subr.mxu0 0.0
        %448 = vmatpush1.msra.mxu0 %v388
        %449 = vmatprep.subr.mxu0 0.0
        %450 = vmatpush1.msra.mxu0 %v389
        %451 = vmatprep.subr.mxu0 0.0
        %452 = vmatpush1.msra.mxu0 %v390
        %453 = vmatprep.subr.mxu0 0.0
        %454 = vmatpush1.msra.mxu0 %v391
        %455 = vmatprep.subr.mxu0 0.0
        %456 = vmatpush1.msra.mxu0 %v392
        %457 = vmatprep.mubr.f32.mxu0 %v287
        %458 = vmatmul.mubr.f32.gmra.mrb[0].mxu0 %v253
        %v459 = vpop.f32.mrb[0].mxu0
        %v460 = vadd.f32 0.0, %v459
        %v461 = vpop.f32.mrb[0].mxu0
        %462 = vdwg.mxu0
        %s463 = scalar_lea.vmem %s1, 8
        %v464 = vld [vmem:[%s463] sm:$0xff]
        %vm465 = vcmask 31744
        %v467 = vsel %vm465, %v464, 0
        %vm469 = vcmask 1043456
        %v471 = vsel %vm469, %v460, 0
        %473 = vmatprep.subr.mxu0 0.0
        %474 = vmatpush1.msra.mxu0 %v471
        %475 = vmatprep.subr.mxu0 0.0
        %476 = vmatpush1.msra.mxu0 0.0
        %477 = vmatprep.subr.mxu0 0.0
        %478 = vmatpush1.msra.mxu0 0.0
        %479 = vmatprep.subr.mxu0 0.0
        %480 = vmatpush1.msra.mxu0 0.0
        %481 = vmatprep.subr.mxu0 0.0
        %482 = vmatpush1.msra.mxu0 0.0
        %483 = vmatprep.subr.mxu0 0.0
        %484 = vmatpush1.msra.mxu0 0.0
        %485 = vmatprep.subr.mxu0 0.0
        %486 = vmatpush1.msra.mxu0 0.0
        %487 = vmatprep.subr.mxu0 0.0
        %488 = vmatpush1.msra.mxu0 0.0
        %489 = vmatprep.subr.mxu0 0.0
        %490 = vmatpush1.msra.mxu0 0.0
        %491 = vmatprep.subr.mxu0 0.0
        %492 = vmatpush1.msra.mxu0 0.0
        %493 = vmatprep.subr.mxu0 0.0
        %494 = vmatpush1.msra.mxu0 0.0
        %495 = vmatprep.subr.mxu0 0.0
        %496 = vmatpush1.msra.mxu0 0.0
        %497 = vmatprep.subr.mxu0 0.0
        %498 = vmatpush1.msra.mxu0 0.0
        %499 = vmatprep.subr.mxu0 0.0
        %500 = vmatpush1.msra.mxu0 0.0
        %501 = vmatprep.subr.mxu0 0.0
        %502 = vmatpush1.msra.mxu0 0.0
        %503 = vmatprep.subr.mxu0 0.0
        %504 = vmatpush1.msra.mxu0 0.0
        %505 = vmatprep.subr.mxu0 0.0
        %506 = vmatpush1.msra.mxu0 0.0
        %507 = vmatprep.subr.mxu0 0.0
        %508 = vmatpush1.msra.mxu0 0.0
        %509 = vmatprep.subr.mxu0 0.0
        %510 = vmatpush1.msra.mxu0 0.0
        %511 = vmatprep.subr.mxu0 0.0
        %512 = vmatpush1.msra.mxu0 0.0
        %513 = vmatprep.subr.mxu0 0.0
        %514 = vmatpush1.msra.mxu0 0.0
        %515 = vmatprep.subr.mxu0 0.0
        %516 = vmatpush1.msra.mxu0 0.0
        %517 = vmatprep.subr.mxu0 0.0
        %518 = vmatpush1.msra.mxu0 0.0
        %519 = vmatprep.subr.mxu0 0.0
        %520 = vmatpush1.msra.mxu0 0.0
        %521 = vmatprep.subr.mxu0 0.0
        %522 = vmatpush1.msra.mxu0 0.0
        %523 = vmatprep.subr.mxu0 0.0
        %524 = vmatpush1.msra.mxu0 0.0
        %525 = vmatprep.subr.mxu0 0.0
        %526 = vmatpush1.msra.mxu0 0.0
        %527 = vmatprep.subr.mxu0 0.0
        %528 = vmatpush1.msra.mxu0 0.0
        %529 = vmatprep.subr.mxu0 0.0
        %530 = vmatpush1.msra.mxu0 0.0
        %531 = vmatprep.subr.mxu0 0.0
        %532 = vmatpush1.msra.mxu0 0.0
        %533 = vmatprep.subr.mxu0 0.0
        %534 = vmatpush1.msra.mxu0 0.0
        %535 = vmatprep.subr.mxu0 0.0
        %536 = vmatpush1.msra.mxu0 0.0
        %537 = vmatprep.mubr.f32.mxu0 0.0
        %538 = vmatmul.mubr.f32.gmra.mrb[0].mxu0 %v467
        %v539 = vpop.f32.mrb[0].mxu0
        %v540 = vadd.f32 0.0, %v539
        %v541 = vpop.f32.mrb[0].mxu0
        %542 = vdwg.mxu0
        %v544 = vsel %vm465, %v359, 0
        %v547 = vsel %vm469, %v356, 0
        %549 = vmatprep.subr.mxu0 0.0
        %550 = vmatpush1.msra.mxu0 %v547
        %551 = vmatprep.subr.mxu0 0.0
        %552 = vmatpush1.msra.mxu0 0.0
        %553 = vmatprep.subr.mxu0 0.0
        %554 = vmatpush1.msra.mxu0 0.0
        %555 = vmatprep.subr.mxu0 0.0
        %556 = vmatpush1.msra.mxu0 0.0
        %557 = vmatprep.subr.mxu0 0.0
        %558 = vmatpush1.msra.mxu0 0.0
        %559 = vmatprep.subr.mxu0 0.0
        %560 = vmatpush1.msra.mxu0 0.0
        %561 = vmatprep.subr.mxu0 0.0
        %562 = vmatpush1.msra.mxu0 0.0
        %563 = vmatprep.subr.mxu0 0.0
        %564 = vmatpush1.msra.mxu0 0.0
        %565 = vmatprep.subr.mxu0 0.0
        %566 = vmatpush1.msra.mxu0 0.0
        %567 = vmatprep.subr.mxu0 0.0
        %568 = vmatpush1.msra.mxu0 0.0
        %569 = vmatprep.subr.mxu0 0.0
        %570 = vmatpush1.msra.mxu0 0.0
        %571 = vmatprep.subr.mxu0 0.0
        %572 = vmatpush1.msra.mxu0 0.0
        %573 = vmatprep.subr.mxu0 0.0
        %574 = vmatpush1.msra.mxu0 0.0
        %575 = vmatprep.subr.mxu0 0.0
        %576 = vmatpush1.msra.mxu0 0.0
        %577 = vmatprep.subr.mxu0 0.0
        %578 = vmatpush1.msra.mxu0 0.0
        %579 = vmatprep.subr.mxu0 0.0
        %580 = vmatpush1.msra.mxu0 0.0
        %581 = vmatprep.subr.mxu0 0.0
        %582 = vmatpush1.msra.mxu0 0.0
        %583 = vmatprep.subr.mxu0 0.0
        %584 = vmatpush1.msra.mxu0 0.0
        %585 = vmatprep.subr.mxu0 0.0
        %586 = vmatpush1.msra.mxu0 0.0
        %587 = vmatprep.subr.mxu0 0.0
        %588 = vmatpush1.msra.mxu0 0.0
        %589 = vmatprep.subr.mxu0 0.0
        %590 = vmatpush1.msra.mxu0 0.0
        %591 = vmatprep.subr.mxu0 0.0
        %592 = vmatpush1.msra.mxu0 0.0
        %593 = vmatprep.subr.mxu0 0.0
        %594 = vmatpush1.msra.mxu0 0.0
        %595 = vmatprep.subr.mxu0 0.0
        %596 = vmatpush1.msra.mxu0 0.0
        %597 = vmatprep.subr.mxu0 0.0
        %598 = vmatpush1.msra.mxu0 0.0
        %599 = vmatprep.subr.mxu0 0.0
        %600 = vmatpush1.msra.mxu0 0.0
        %601 = vmatprep.subr.mxu0 0.0
        %602 = vmatpush1.msra.mxu0 0.0
        %603 = vmatprep.subr.mxu0 0.0
        %604 = vmatpush1.msra.mxu0 0.0
        %605 = vmatprep.subr.mxu0 0.0
        %606 = vmatpush1.msra.mxu0 0.0
        %607 = vmatprep.subr.mxu0 0.0
        %608 = vmatpush1.msra.mxu0 0.0
        %609 = vmatprep.subr.mxu0 0.0
        %610 = vmatpush1.msra.mxu0 0.0
        %611 = vmatprep.subr.mxu0 0.0
        %612 = vmatpush1.msra.mxu0 0.0
        %613 = vmatprep.mubr.f32.mxu0 0.0
        %614 = vmatmul.mubr.f32.gmra.mrb[0].mxu0 %v544
        %v615 = vpop.f32.mrb[0].mxu0
        %v616 = vadd.f32 %v540, %v615
        %v617 = vpop.f32.mrb[0].mxu0
        %618 = vdwg.mxu0
        %s619 = scalar_lea.vmem %s2, 512
        %v620 = vld [vmem:[%s619] sm:$0xff]
        %v621 = vld [vmem:[%s619 + $0x8] sm:$0xff]
        %v622 = vld [vmem:[%s619 + $0x10] sm:$0xff]
        %v623 = vld [vmem:[%s619 + $0x18] sm:$0xff]
        %v624 = vld [vmem:[%s619 + $0x20] sm:$0xff]
        %v625 = vld [vmem:[%s619 + $0x28] sm:$0xff]
        %v626 = vld [vmem:[%s619 + $0x30] sm:$0xff]
        %v627 = vld [vmem:[%s619 + $0x38] sm:$0xff]
        %v628 = vld [vmem:[%s619 + $0x40] sm:$0xff]
        %v629 = vld [vmem:[%s619 + $0x48] sm:$0xff]
        %v630 = vld [vmem:[%s619 + $0x50] sm:$0xff]
        %v631 = vld [vmem:[%s619 + $0x58] sm:$0xff]
        %v632 = vld [vmem:[%s619 + $0x60] sm:$0xff]
        %v633 = vld [vmem:[%s619 + $0x68] sm:$0xff]
        %v634 = vld [vmem:[%s619 + $0x70] sm:$0xff]
        %v635 = vld [vmem:[%s619 + $0x78] sm:$0xff]
        %v636 = vld [vmem:[%s619 + $0x80] sm:$0xff]
        %v637 = vld [vmem:[%s619 + $0x88] sm:$0xff]
        %v638 = vld [vmem:[%s619 + $0x90] sm:$0xff]
        %v639 = vld [vmem:[%s619 + $0x98] sm:$0xff]
        %v640 = vld [vmem:[%s619 + $0xa0] sm:$0xff]
        %v641 = vld [vmem:[%s619 + $0xa8] sm:$0xff]
        %v642 = vld [vmem:[%s619 + $0xb0] sm:$0xff]
        %v643 = vld [vmem:[%s619 + $0xb8] sm:$0xff]
        %v644 = vld [vmem:[%s619 + $0xc0] sm:$0xff]
        %v645 = vld [vmem:[%s619 + $0xc8] sm:$0xff]
        %v646 = vld [vmem:[%s619 + $0xd0] sm:$0xff]
        %v647 = vld [vmem:[%s619 + $0xd8] sm:$0xff]
        %v648 = vld [vmem:[%s619 + $0xe0] sm:$0xff]
        %v649 = vld [vmem:[%s619 + $0xe8] sm:$0xff]
        %v650 = vld [vmem:[%s619 + $0xf0] sm:$0xff]
        %v651 = vld [vmem:[%s619 + $0xf8] sm:$0xff]
        %652 = vmatprep.subr.mxu0 0.0
        %653 = vmatpush1.msra.mxu0 %v620
        %654 = vmatprep.subr.mxu0 0.0
        %655 = vmatpush1.msra.mxu0 %v621
        %656 = vmatprep.subr.mxu0 0.0
        %657 = vmatpush1.msra.mxu0 %v622
        %658 = vmatprep.subr.mxu0 0.0
        %659 = vmatpush1.msra.mxu0 %v623
        %660 = vmatprep.subr.mxu0 0.0
        %661 = vmatpush1.msra.mxu0 %v624
        %662 = vmatprep.subr.mxu0 0.0
        %663 = vmatpush1.msra.mxu0 %v625
        %664 = vmatprep.subr.mxu0 0.0
        %665 = vmatpush1.msra.mxu0 %v626
        %666 = vmatprep.subr.mxu0 0.0
        %667 = vmatpush1.msra.mxu0 %v627
        %668 = vmatprep.subr.mxu0 0.0
        %669 = vmatpush1.msra.mxu0 %v628
        %670 = vmatprep.subr.mxu0 0.0
        %671 = vmatpush1.msra.mxu0 %v629
        %672 = vmatprep.subr.mxu0 0.0
        %673 = vmatpush1.msra.mxu0 %v630
        %674 = vmatprep.subr.mxu0 0.0
        %675 = vmatpush1.msra.mxu0 %v631
        %676 = vmatprep.subr.mxu0 0.0
        %677 = vmatpush1.msra.mxu0 %v632
        %678 = vmatprep.subr.mxu0 0.0
        %679 = vmatpush1.msra.mxu0 %v633
        %680 = vmatprep.subr.mxu0 0.0
        %681 = vmatpush1.msra.mxu0 %v634
        %682 = vmatprep.subr.mxu0 0.0
        %683 = vmatpush1.msra.mxu0 %v635
        %684 = vmatprep.subr.mxu0 0.0
        %685 = vmatpush1.msra.mxu0 %v636
        %686 = vmatprep.subr.mxu0 0.0
        %687 = vmatpush1.msra.mxu0 %v637
        %688 = vmatprep.subr.mxu0 0.0
        %689 = vmatpush1.msra.mxu0 %v638
        %690 = vmatprep.subr.mxu0 0.0
        %691 = vmatpush1.msra.mxu0 %v639
        %692 = vmatprep.subr.mxu0 0.0
        %693 = vmatpush1.msra.mxu0 %v640
        %694 = vmatprep.subr.mxu0 0.0
        %695 = vmatpush1.msra.mxu0 %v641
        %696 = vmatprep.subr.mxu0 0.0
        %697 = vmatpush1.msra.mxu0 %v642
        %698 = vmatprep.subr.mxu0 0.0
        %699 = vmatpush1.msra.mxu0 %v643
        %700 = vmatprep.subr.mxu0 0.0
        %701 = vmatpush1.msra.mxu0 %v644
        %702 = vmatprep.subr.mxu0 0.0
        %703 = vmatpush1.msra.mxu0 %v645
        %704 = vmatprep.subr.mxu0 0.0
        %705 = vmatpush1.msra.mxu0 %v646
        %706 = vmatprep.subr.mxu0 0.0
        %707 = vmatpush1.msra.mxu0 %v647
        %708 = vmatprep.subr.mxu0 0.0
        %709 = vmatpush1.msra.mxu0 %v648
        %710 = vmatprep.subr.mxu0 0.0
        %711 = vmatpush1.msra.mxu0 %v649
        %712 = vmatprep.subr.mxu0 0.0
        %713 = vmatpush1.msra.mxu0 %v650
        %714 = vmatprep.subr.mxu0 0.0
        %715 = vmatpush1.msra.mxu0 %v651
        %716 = vmatprep.mubr.f32.mxu0 %v287
        %717 = vmatmul.mubr.f32.gmra.mrb[0].mxu0 %v253
        %v718 = vpop.f32.mrb[0].mxu0
        %v719 = vadd.f32 0.0, %v718
        %v720 = vpop.f32.mrb[0].mxu0
        %721 = vdwg.mxu0
        %s722 = scalar_lea.vmem %s1, 16
        %v723 = vld [vmem:[%s722] sm:$0xff]
        %v725 = vsel %vm465, %v723, 0
        %v728 = vsel %vm469, %v719, 0
        %730 = vmatprep.subr.mxu0 0.0
        %731 = vmatpush1.msra.mxu0 %v728
        %732 = vmatprep.subr.mxu0 0.0
        %733 = vmatpush1.msra.mxu0 0.0
        %734 = vmatprep.subr.mxu0 0.0
        %735 = vmatpush1.msra.mxu0 0.0
        %736 = vmatprep.subr.mxu0 0.0
        %737 = vmatpush1.msra.mxu0 0.0
        %738 = vmatprep.subr.mxu0 0.0
        %739 = vmatpush1.msra.mxu0 0.0
        %740 = vmatprep.subr.mxu0 0.0
        %741 = vmatpush1.msra.mxu0 0.0
        %742 = vmatprep.subr.mxu0 0.0
        %743 = vmatpush1.msra.mxu0 0.0
        %744 = vmatprep.subr.mxu0 0.0
        %745 = vmatpush1.msra.mxu0 0.0
        %746 = vmatprep.subr.mxu0 0.0
        %747 = vmatpush1.msra.mxu0 0.0
        %748 = vmatprep.subr.mxu0 0.0
        %749 = vmatpush1.msra.mxu0 0.0
        %750 = vmatprep.subr.mxu0 0.0
        %751 = vmatpush1.msra.mxu0 0.0
        %752 = vmatprep.subr.mxu0 0.0
        %753 = vmatpush1.msra.mxu0 0.0
        %754 = vmatprep.subr.mxu0 0.0
        %755 = vmatpush1.msra.mxu0 0.0
        %756 = vmatprep.subr.mxu0 0.0
        %757 = vmatpush1.msra.mxu0 0.0
        %758 = vmatprep.subr.mxu0 0.0
        %759 = vmatpush1.msra.mxu0 0.0
        %760 = vmatprep.subr.mxu0 0.0
        %761 = vmatpush1.msra.mxu0 0.0
        %762 = vmatprep.subr.mxu0 0.0
        %763 = vmatpush1.msra.mxu0 0.0
        %764 = vmatprep.subr.mxu0 0.0
        %765 = vmatpush1.msra.mxu0 0.0
        %766 = vmatprep.subr.mxu0 0.0
        %767 = vmatpush1.msra.mxu0 0.0
        %768 = vmatprep.subr.mxu0 0.0
        %769 = vmatpush1.msra.mxu0 0.0
        %770 = vmatprep.subr.mxu0 0.0
        %771 = vmatpush1.msra.mxu0 0.0
        %772 = vmatprep.subr.mxu0 0.0
        %773 = vmatpush1.msra.mxu0 0.0
        %774 = vmatprep.subr.mxu0 0.0
        %775 = vmatpush1.msra.mxu0 0.0
        %776 = vmatprep.subr.mxu0 0.0
        %777 = vmatpush1.msra.mxu0 0.0
        %778 = vmatprep.subr.mxu0 0.0
        %779 = vmatpush1.msra.mxu0 0.0
        %780 = vmatprep.subr.mxu0 0.0
        %781 = vmatpush1.msra.mxu0 0.0
        %782 = vmatprep.subr.mxu0 0.0
        %783 = vmatpush1.msra.mxu0 0.0
        %784 = vmatprep.subr.mxu0 0.0
        %785 = vmatpush1.msra.mxu0 0.0
        %786 = vmatprep.subr.mxu0 0.0
        %787 = vmatpush1.msra.mxu0 0.0
        %788 = vmatprep.subr.mxu0 0.0
        %789 = vmatpush1.msra.mxu0 0.0
        %790 = vmatprep.subr.mxu0 0.0
        %791 = vmatpush1.msra.mxu0 0.0
        %792 = vmatprep.subr.mxu0 0.0
        %793 = vmatpush1.msra.mxu0 0.0
        %794 = vmatprep.mubr.f32.mxu0 0.0
        %795 = vmatmul.mubr.f32.gmra.mrb[0].mxu0 %v725
        %v796 = vpop.f32.mrb[0].mxu0
        %v797 = vadd.f32 0.0, %v796
        %v798 = vpop.f32.mrb[0].mxu0
        %799 = vdwg.mxu0
        %v800 = vadd.f32 %v616, %v797
        %s801 = scalar_lea.vmem %s2, 768
        %v802 = vld [vmem:[%s801] sm:$0xff]
        %v803 = vld [vmem:[%s801 + $0x8] sm:$0xff]
        %v804 = vld [vmem:[%s801 + $0x10] sm:$0xff]
        %v805 = vld [vmem:[%s801 + $0x18] sm:$0xff]
        %v806 = vld [vmem:[%s801 + $0x20] sm:$0xff]
        %v807 = vld [vmem:[%s801 + $0x28] sm:$0xff]
        %v808 = vld [vmem:[%s801 + $0x30] sm:$0xff]
        %v809 = vld [vmem:[%s801 + $0x38] sm:$0xff]
        %v810 = vld [vmem:[%s801 + $0x40] sm:$0xff]
        %v811 = vld [vmem:[%s801 + $0x48] sm:$0xff]
        %v812 = vld [vmem:[%s801 + $0x50] sm:$0xff]
        %v813 = vld [vmem:[%s801 + $0x58] sm:$0xff]
        %v814 = vld [vmem:[%s801 + $0x60] sm:$0xff]
        %v815 = vld [vmem:[%s801 + $0x68] sm:$0xff]
        %v816 = vld [vmem:[%s801 + $0x70] sm:$0xff]
        %v817 = vld [vmem:[%s801 + $0x78] sm:$0xff]
        %v818 = vld [vmem:[%s801 + $0x80] sm:$0xff]
        %v819 = vld [vmem:[%s801 + $0x88] sm:$0xff]
        %v820 = vld [vmem:[%s801 + $0x90] sm:$0xff]
        %v821 = vld [vmem:[%s801 + $0x98] sm:$0xff]
        %v822 = vld [vmem:[%s801 + $0xa0] sm:$0xff]
        %v823 = vld [vmem:[%s801 + $0xa8] sm:$0xff]
        %v824 = vld [vmem:[%s801 + $0xb0] sm:$0xff]
        %v825 = vld [vmem:[%s801 + $0xb8] sm:$0xff]
        %v826 = vld [vmem:[%s801 + $0xc0] sm:$0xff]
        %v827 = vld [vmem:[%s801 + $0xc8] sm:$0xff]
        %v828 = vld [vmem:[%s801 + $0xd0] sm:$0xff]
        %v829 = vld [vmem:[%s801 + $0xd8] sm:$0xff]
        %v830 = vld [vmem:[%s801 + $0xe0] sm:$0xff]
        %v831 = vld [vmem:[%s801 + $0xe8] sm:$0xff]
        %v832 = vld [vmem:[%s801 + $0xf0] sm:$0xff]
        %v833 = vld [vmem:[%s801 + $0xf8] sm:$0xff]
        %834 = vmatprep.subr.mxu0 0.0
        %835 = vmatpush1.msra.mxu0 %v802
        %836 = vmatprep.subr.mxu0 0.0
        %837 = vmatpush1.msra.mxu0 %v803
        %838 = vmatprep.subr.mxu0 0.0
        %839 = vmatpush1.msra.mxu0 %v804
        %840 = vmatprep.subr.mxu0 0.0
        %841 = vmatpush1.msra.mxu0 %v805
        %842 = vmatprep.subr.mxu0 0.0
        %843 = vmatpush1.msra.mxu0 %v806
        %844 = vmatprep.subr.mxu0 0.0
        %845 = vmatpush1.msra.mxu0 %v807
        %846 = vmatprep.subr.mxu0 0.0
        %847 = vmatpush1.msra.mxu0 %v808
        %848 = vmatprep.subr.mxu0 0.0
        %849 = vmatpush1.msra.mxu0 %v809
        %850 = vmatprep.subr.mxu0 0.0
        %851 = vmatpush1.msra.mxu0 %v810
        %852 = vmatprep.subr.mxu0 0.0
        %853 = vmatpush1.msra.mxu0 %v811
        %854 = vmatprep.subr.mxu0 0.0
        %855 = vmatpush1.msra.mxu0 %v812
        %856 = vmatprep.subr.mxu0 0.0
        %857 = vmatpush1.msra.mxu0 %v813
        %858 = vmatprep.subr.mxu0 0.0
        %859 = vmatpush1.msra.mxu0 %v814
        %860 = vmatprep.subr.mxu0 0.0
        %861 = vmatpush1.msra.mxu0 %v815
        %862 = vmatprep.subr.mxu0 0.0
        %863 = vmatpush1.msra.mxu0 %v816
        %864 = vmatprep.subr.mxu0 0.0
        %865 = vmatpush1.msra.mxu0 %v817
        %866 = vmatprep.subr.mxu0 0.0
        %867 = vmatpush1.msra.mxu0 %v818
        %868 = vmatprep.subr.mxu0 0.0
        %869 = vmatpush1.msra.mxu0 %v819
        %870 = vmatprep.subr.mxu0 0.0
        %871 = vmatpush1.msra.mxu0 %v820
        %872 = vmatprep.subr.mxu0 0.0
        %873 = vmatpush1.msra.mxu0 %v821
        %874 = vmatprep.subr.mxu0 0.0
        %875 = vmatpush1.msra.mxu0 %v822
        %876 = vmatprep.subr.mxu0 0.0
        %877 = vmatpush1.msra.mxu0 %v823
        %878 = vmatprep.subr.mxu0 0.0
        %879 = vmatpush1.msra.mxu0 %v824
        %880 = vmatprep.subr.mxu0 0.0
        %881 = vmatpush1.msra.mxu0 %v825
        %882 = vmatprep.subr.mxu0 0.0
        %883 = vmatpush1.msra.mxu0 %v826
        %884 = vmatprep.subr.mxu0 0.0
        %885 = vmatpush1.msra.mxu0 %v827
        %886 = vmatprep.subr.mxu0 0.0
        %887 = vmatpush1.msra.mxu0 %v828
        %888 = vmatprep.subr.mxu0 0.0
        %889 = vmatpush1.msra.mxu0 %v829
        %890 = vmatprep.subr.mxu0 0.0
        %891 = vmatpush1.msra.mxu0 %v830
        %892 = vmatprep.subr.mxu0 0.0
        %893 = vmatpush1.msra.mxu0 %v831
        %894 = vmatprep.subr.mxu0 0.0
        %895 = vmatpush1.msra.mxu0 %v832
        %896 = vmatprep.subr.mxu0 0.0
        %897 = vmatpush1.msra.mxu0 %v833
        %898 = vmatprep.mubr.f32.mxu0 %v287
        %899 = vmatmul.mubr.f32.gmra.mrb[0].mxu0 %v253
        %v900 = vpop.f32.mrb[0].mxu0
        %v901 = vadd.f32 0.0, %v900
        %v902 = vpop.f32.mrb[0].mxu0
        %903 = vdwg.mxu0
        %s904 = scalar_lea.vmem %s1, 24
        %v905 = vld [vmem:[%s904] sm:$0xff]
        %v907 = vsel %vm465, %v905, 0
        %v910 = vsel %vm469, %v901, 0
        %912 = vmatprep.subr.mxu0 0.0
        %913 = vmatpush1.msra.mxu0 %v910
        %914 = vmatprep.subr.mxu0 0.0
        %915 = vmatpush1.msra.mxu0 0.0
        %916 = vmatprep.subr.mxu0 0.0
        %917 = vmatpush1.msra.mxu0 0.0
        %918 = vmatprep.subr.mxu0 0.0
        %919 = vmatpush1.msra.mxu0 0.0
        %920 = vmatprep.subr.mxu0 0.0
        %921 = vmatpush1.msra.mxu0 0.0
        %922 = vmatprep.subr.mxu0 0.0
        %923 = vmatpush1.msra.mxu0 0.0
        %924 = vmatprep.subr.mxu0 0.0
        %925 = vmatpush1.msra.mxu0 0.0
        %926 = vmatprep.subr.mxu0 0.0
        %927 = vmatpush1.msra.mxu0 0.0
        %928 = vmatprep.subr.mxu0 0.0
        %929 = vmatpush1.msra.mxu0 0.0
        %930 = vmatprep.subr.mxu0 0.0
        %931 = vmatpush1.msra.mxu0 0.0
        %932 = vmatprep.subr.mxu0 0.0
        %933 = vmatpush1.msra.mxu0 0.0
        %934 = vmatprep.subr.mxu0 0.0
        %935 = vmatpush1.msra.mxu0 0.0
        %936 = vmatprep.subr.mxu0 0.0
        %937 = vmatpush1.msra.mxu0 0.0
        %938 = vmatprep.subr.mxu0 0.0
        %939 = vmatpush1.msra.mxu0 0.0
        %940 = vmatprep.subr.mxu0 0.0
        %941 = vmatpush1.msra.mxu0 0.0
        %942 = vmatprep.subr.mxu0 0.0
        %943 = vmatpush1.msra.mxu0 0.0
        %944 = vmatprep.subr.mxu0 0.0
        %945 = vmatpush1.msra.mxu0 0.0
        %946 = vmatprep.subr.mxu0 0.0
        %947 = vmatpush1.msra.mxu0 0.0
        %948 = vmatprep.subr.mxu0 0.0
        %949 = vmatpush1.msra.mxu0 0.0
        %950 = vmatprep.subr.mxu0 0.0
        %951 = vmatpush1.msra.mxu0 0.0
        %952 = vmatprep.subr.mxu0 0.0
        %953 = vmatpush1.msra.mxu0 0.0
        %954 = vmatprep.subr.mxu0 0.0
        %955 = vmatpush1.msra.mxu0 0.0
        %956 = vmatprep.subr.mxu0 0.0
        %957 = vmatpush1.msra.mxu0 0.0
        %958 = vmatprep.subr.mxu0 0.0
        %959 = vmatpush1.msra.mxu0 0.0
        %960 = vmatprep.subr.mxu0 0.0
        %961 = vmatpush1.msra.mxu0 0.0
        %962 = vmatprep.subr.mxu0 0.0
        %963 = vmatpush1.msra.mxu0 0.0
        %964 = vmatprep.subr.mxu0 0.0
        %965 = vmatpush1.msra.mxu0 0.0
        %966 = vmatprep.subr.mxu0 0.0
        %967 = vmatpush1.msra.mxu0 0.0
        %968 = vmatprep.subr.mxu0 0.0
        %969 = vmatpush1.msra.mxu0 0.0
        %970 = vmatprep.subr.mxu0 0.0
        %971 = vmatpush1.msra.mxu0 0.0
        %972 = vmatprep.subr.mxu0 0.0
        %973 = vmatpush1.msra.mxu0 0.0
        %974 = vmatprep.subr.mxu0 0.0
        %975 = vmatpush1.msra.mxu0 0.0
        %976 = vmatprep.mubr.f32.mxu0 0.0
        %977 = vmatmul.mubr.f32.gmra.mrb[0].mxu0 %v907
        %v978 = vpop.f32.mrb[0].mxu0
        %v979 = vadd.f32 0.0, %v978
        %v980 = vpop.f32.mrb[0].mxu0
        %981 = vdwg.mxu0
        %v982 = vadd.f32 %v800, %v979
        %v983 = vld [vmem:[%s3] sm:$0xff]
        %985 = vset.pattern.permute.xlu0 0
        %986 = vperm.xlu0 %985, %v983
        %v987 = vpop.permute.xlu0 %986
        %v989 = vadd.f32 %v982, %v987
        %vm990 = vcmp.gt.f32.partialorder %v989, 0.0
        %v991 = vld [vmem:[%s4] sm:$0xff]
        %993 = vset.pattern.permute.xlu0 0
        %994 = vperm.xlu0 %993, %v991
        %v995 = vpop.permute.xlu0 %994
        %v997 = vmul.f32 %v995, %v989
        %v998 = vsel %vm990, %v989, %v997
        %vm999 = vcmask 523264
        %1000 = vst.msk [vmem:[%s242] sm:$0xff] %vm999, %v998
        %s1001 = sand.u32 %s153, 1
        %s1002 = scalar_lea.sflag [#allocation3], %s1001
        %s1003 = sand.u32 %s153, 1
        %s1004 = smul.addr %s1003, 8
        %s1005 = scalar_lea.vmem [#allocation2], %s1004
        // Predicated region
        $region41: #{tpu_custom_call.1} parent=39 // pred_check
          %p1006 = pneg %p163
        $region42: #{tpu_custom_call.1} parent=39 // pred_check_branch
          %1008 = sbr.rel (%p1006) target = $region44
        $region43: #{tpu_custom_call.1} parent=39 // pred_region
          %s1010 = ssub.s32 128, 128
          %1011 = vsyncadd %s1002, %s1010
          %s1012 = sadd.s32 %s24, %s23
          %s1013 = smul.addr %s1012, 128
          %s1014 = scalar_lea.hbm %s5, %s1013
          %s1016 = sshll.u32 %s1005, 4
          %s1017 = int_to_ptr.vmem [resolvable:$true] %s1016
          %1019 = dma.vmem_to_hbm [thread:$0]  %s1017, 128, %s1014, %s1002
        $region44: #{tpu_custom_call.1} parent=39 // pred_fallthru
          _
      $region40: #{tpu_custom_call.1} parent=5 // pred_fallthru
        _
      %p1020 = scmp.le.s32.totalorder 2, %s14
      // Predicated region
      $region45: #{tpu_custom_call.1} parent=5 // pred_check
        %p1021 = pneg %p1020
      $region46: #{tpu_custom_call.1} parent=5 // pred_check_branch
        %1023 = sbr.rel (%p1021) target = $region48
      $region47: #{tpu_custom_call.1} parent=5 // pred_region
        %s1024 = ssub.s32 %s14, 2
        // Predicated region
        $region49: #{tpu_custom_call.1} parent=47 // pred_check
          %p1025 = pneg %p169
        $region50: #{tpu_custom_call.1} parent=47 // pred_check_branch
          %1027 = sbr.rel (%p1025) target = $region52
        $region51: #{tpu_custom_call.1} parent=47 // pred_region
          %s1028 = sand.u32 %s154, 1
          %s1029 = scalar_lea.sflag [#allocation3], %s1028
          %s1030 = sand.u32 %s154, 1
          %s1031 = smul.addr %s1030, 8
          %s1032 = scalar_lea.vmem [#allocation2], %s1031
          %1033 = dma.done %s1029, 128
        $region52: #{tpu_custom_call.1} parent=47 // pred_fallthru
          _
      $region48: #{tpu_custom_call.1} parent=5 // pred_fallthru
        _
    $region6: #{tpu_custom_call.1} parent=1 // loop_footer
      %s18 = sadd.s32 1, %s14
    $region7: #{tpu_custom_call.1} parent=1 // loop_footer_branch
      %13 = sbr.rel target = $region3
    $region8: #{tpu_custom_call.1} parent=1 // loop_exit
      _
    %1034 = vsyncpa [#allocation3], 1
    %s1035 = scalar_lea.sflag [#allocation3], 1
    %1036 = vsyncpa %s1035, 1

</llo_original>
